<compile_context>
chip_gen: v5e
topology: v5e:2x2
jax: 0.10.0
libtpu: 0.0.40
codegen_flags: <defaults>
</compile_context>

<pallas_src>
import functools

import jax
import jax.numpy as jnp
from jax import lax
from jax.experimental import pallas as pl
from jax.experimental.pallas import tpu as pltpu

_LANE = 128      # TPU lane width (last dim)
_SUBLANE = 8     # TPU sublane count (second-to-last dim)


def _tpu_kind():
    try:
        return jax.devices()[0].device_kind.lower()
    except Exception:
        return ""


def _default_num_cores(kind):
    try:
        nc = getattr(jax.devices()[0], "num_cores", None)
        if nc:
            return max(1, min(int(nc), 8))
    except Exception:
        pass
    return 2 if "v7" in kind else 1


def _margin_loss_kernel(margin_ref, pos_ref, neg_ref, out_ref, acc_ref, *,
                        block_rows, steps_per_core, batch, native_sub):
    """One grid step: hinge on a (block_rows, 128) tile, fold into (8,128)."""
    core = pl.program_id(0)
    step = pl.program_id(1)
    block_elems = block_rows * _LANE

    @pl.when(step == 0)
    def _init():
        acc_ref[...] = jnp.zeros_like(acc_ref)

    if native_sub:
        # bf16 subtract (one packed-vreg op), single cast of the difference.
        diff = (neg_ref[...] - pos_ref[...]).astype(jnp.float32)
    else:
        diff = (neg_ref[...].astype(jnp.float32)
                - pos_ref[...].astype(jnp.float32))
    margin = margin_ref[0]                                 # SMEM scalar
    hinge = jnp.maximum(diff + margin, 0.0)                # (block_rows, 128)

    # Global element offset of this tile (unclamped so phantom tail steps,
    # whose input DMA is clamped onto the last real block, mask to zero).
    global_step = core * steps_per_core + step
    start_elem = global_step * block_elems
    fully_in_bounds = start_elem + block_elems <= batch

    @pl.when(fully_in_bounds)
    def _accum_hot():
        # Layout-compatible reshape; sum over the leading axis is pure VALU
        # vreg adds (no XLU).  Accumulator is a single vreg.
        acc_ref[...] += jnp.sum(hinge.reshape(-1, _SUBLANE, _LANE), axis=0)

    @pl.when(jnp.logical_not(fully_in_bounds))
    def _accum_ragged():
        row = lax.broadcasted_iota(jnp.int32, (block_rows, _LANE), 0)
        lane = lax.broadcasted_iota(jnp.int32, (block_rows, _LANE), 1)
        gidx = start_elem + row * _LANE + lane
        masked = jnp.where(gidx < batch, hinge, 0.0)
        acc_ref[...] += jnp.sum(masked.reshape(-1, _SUBLANE, _LANE), axis=0)

    @pl.when(step == steps_per_core - 1)
    def _finalize():
        out_ref[0] = acc_ref[...]                          # (8, 128) partial


def margin_loss(pos_score, neg_score, margin, *,
                block_rows=None, num_cores=None, min_kernel_batch=32768):
    """Pallas equivalent of MarginLoss(margin)(pos_score, neg_score).

    block_rows: rows (of 128 lanes) per pipeline step.  Auto: 4096 on
      v6e/v7x, 2048 otherwise (VMEM limit is pinned explicitly).
    num_cores: leading "parallel" grid axis sharding the reduction across
      TensorCores (auto: 2 on v7x, 1 otherwise; always correct).
    min_kernel_batch: below this, use the fused plain-JAX path.
    Assumes batch < 2**31 (int32 global indices).
    """
    assert pos_score.shape == neg_score.shape
    assert pos_score.ndim == 1
    batch = pos_score.shape[0]
    assert batch > 0

    if batch < min_kernel_batch:
        # Tiny batch: let XLA fuse the hinge + mean into surrounding ops.
        return jnp.mean(jnp.maximum(
            neg_score.astype(jnp.float32) - pos_score.astype(jnp.float32)
            + jnp.float32(margin), 0.0))

    # Keep native dtype in HBM (bf16 stays bf16); anything else -> f32.
    if (pos_score.dtype != neg_score.dtype
            or pos_score.dtype not in (jnp.float32, jnp.bfloat16)):
        pos_score = pos_score.astype(jnp.float32)
        neg_score = neg_score.astype(jnp.float32)

    kind = _tpu_kind()
    if block_rows is None:
        block_rows = 4096 if ("v6" in kind or "v7" in kind) else 2048
    if num_cores is None:
        num_cores = _default_num_cores(kind)
    # v5 has no bf16 VALU: keep the f32-cast-first path there.
    native_sub = (pos_score.dtype == jnp.bfloat16) and ("v5" not in kind)

    rows = pl.cdiv(batch, _LANE)
    rows_rounded = pl.cdiv(rows, _SUBLANE) * _SUBLANE
    block_rows_eff = min(max(_SUBLANE, (block_rows // _SUBLANE) * _SUBLANE),
                         rows_rounded)
    total_row_blocks = pl.cdiv(rows, block_rows_eff)
    steps_per_core = pl.cdiv(total_row_blocks, num_cores)

    # Pad only to a full 128-lane row (<=127 elements; no-op when aligned).
    # Pad values are irrelevant: the in-kernel mask zeroes everything >= batch.
    total = rows * _LANE

    def to2d(x):
        if total != batch:
            x = jnp.pad(x, (0, total - batch))
        return x.reshape(rows, _LANE)

    pos2d = to2d(pos_score)
    neg2d = to2d(neg_score)
    margin_arr = jnp.asarray([margin], dtype=jnp.float32)   # SMEM scalar

    def row_map(c, i):
        # Clamp phantom tail steps onto the last real block; their
        # contribution is zeroed by the in-kernel mask.
        return (jnp.minimum(c * steps_per_core + i, total_row_blocks - 1), 0)

    kernel = functools.partial(
        _margin_loss_kernel, block_rows=block_rows_eff,
        steps_per_core=steps_per_core, batch=batch, native_sub=native_sub)

    itemsize = jnp.dtype(pos_score.dtype).itemsize
    in_bytes = 2 * 2 * block_rows_eff * _LANE * itemsize    # 2 inputs x 2 bufs
    vmem_limit = int(min(max(32 << 20, 2 * in_bytes + (4 << 20)), 64 << 20))

    partials = pl.pallas_call(
        kernel,
        out_shape=jax.ShapeDtypeStruct((num_cores, _SUBLANE, _LANE),
                                       jnp.float32),
        grid=(num_cores, steps_per_core),
        in_specs=[
            pl.BlockSpec(memory_space=pltpu.MemorySpace.SMEM),        # margin
            pl.BlockSpec((block_rows_eff, _LANE), row_map),           # pos
            pl.BlockSpec((block_rows_eff, _LANE), row_map),           # neg
        ],
        out_specs=pl.BlockSpec((1, _SUBLANE, _LANE), lambda c, i: (c, 0, 0)),
        scratch_shapes=[pltpu.VMEM((_SUBLANE, _LANE), jnp.float32)],
        compiler_params=pltpu.CompilerParams(
            dimension_semantics=("parallel", "arbitrary"),
            vmem_limit_bytes=vmem_limit),
    )(margin_arr, pos2d, neg2d)

    # Tiny per-core partial reduce + 1/batch scale fuses into surrounding ops.
    return jnp.sum(partials) / batch


def _ref_margin_loss(pos, neg, margin):
    return jnp.mean(jnp.maximum(
        neg.astype(jnp.float32) - pos.astype(jnp.float32) + margin, 0.0))


if __name__ == "__main__":
    key = jax.random.PRNGKey(0)
    k1, k2, k3, k4 = jax.random.split(key, 4)
    margin = 1.0

    # Case 1: module-sized small batch; force the kernel path (single tile).
    batch = 8
    pos_s = jax.random.normal(k1, (batch,), dtype=jnp.float32)
    neg_s = jax.random.normal(k2, (batch,), dtype=jnp.float32)
    loss_s = jax.block_until_ready(
        margin_loss(pos_s, neg_s, margin, min_kernel_batch=0))
    ref_s = _ref_margin_loss(pos_s, neg_s, margin)
    assert jnp.allclose(loss_s, ref_s, atol=1e-6, rtol=1e-6), (loss_s, ref_s)

    # Case 2: ragged batch, multi-step grid + 2-way core-sharded reduction
    # (small block_rows to exercise the accumulator / mask / clamp paths).
    batch = 5000
    pos_l = jax.random.normal(k3, (batch,), dtype=jnp.float32)
    neg_l = jax.random.normal(k4, (batch,), dtype=jnp.float32)
    loss_l = jax.block_until_ready(
        margin_loss(pos_l, neg_l, margin, block_rows=8, num_cores=2,
                    min_kernel_batch=0))
    ref_l = _ref_margin_loss(pos_l, neg_l, margin)
    assert jnp.allclose(loss_l, ref_l, atol=1e-5, rtol=1e-5), (loss_l, ref_l)

    # Case 3: bf16 inputs stay bf16 in HBM; bf16 subtract + single f32 cast.
    pos_b = pos_l.astype(jnp.bfloat16)
    neg_b = neg_l.astype(jnp.bfloat16)
    loss_b = jax.block_until_ready(
        margin_loss(pos_b, neg_b, margin, block_rows=8, num_cores=2,
                    min_kernel_batch=0))
    ref_b = _ref_margin_loss(pos_b, neg_b, margin)
    assert jnp.allclose(loss_b, ref_b, atol=1e-2, rtol=1e-2), (loss_b, ref_b)

    # Case 4: larger aligned batch through the fully-default (auto) config.
    batch = 1 << 18
    pos_x = jax.random.normal(k1, (batch,), dtype=jnp.float32)
    neg_x = jax.random.normal(k2, (batch,), dtype=jnp.float32)
    loss_x = jax.block_until_ready(margin_loss(pos_x, neg_x, margin))
    ref_x = _ref_margin_loss(pos_x, neg_x, margin)
    assert jnp.allclose(loss_x, ref_x, atol=1e-5, rtol=1e-4), (loss_x, ref_x)

    print("KERNEL_OK")
</pallas_src>

<mosaic_0001>
module attributes {stable_mosaic.version = 11 : i64} {
  func.func @_margin_loss_kernel(%arg0: i32, %arg1: i32, %arg2: memref<1xf32, #tpu.memory_space<smem>>, %arg3: memref<8x128xf32, #tpu.memory_space<vmem>>, %arg4: memref<8x128xf32, #tpu.memory_space<vmem>>, %arg5: memref<1x8x128xf32, #tpu.memory_space<vmem>>, %arg6: memref<8x128xf32, #tpu.memory_space<vmem>>) attributes {dimension_semantics = [#tpu.dimension_semantics<parallel>, #tpu.dimension_semantics<arbitrary>], iteration_bounds = array<i64: 1, 1>, scalar_prefetch = 0 : i64, scratch_operands = 1 : i64, tpu.core_type = #tpu.core_type<tc>, window_params = [{transform_indices = @transform_0, window_bounds = array<i64: 1>}, {transform_indices = @transform_1, window_bounds = array<i64: 8, 128>}, {transform_indices = @transform_2, window_bounds = array<i64: 8, 128>}, {transform_indices = @transform_3, window_bounds = array<i64: 1, 8, 128>}]} {
    %c0_i32 = arith.constant 0 : i32
    %0 = arith.cmpi eq, %arg1, %c0_i32 : i32
    %1 = arith.extui %0 : i1 to i32
    %c0_i32_0 = arith.constant 0 : i32
    %2 = arith.cmpi ne, %1, %c0_i32_0 : i32
    scf.if %2 {
      %cst_10 = arith.constant 0.000000e+00 : f32
      %24 = vector.broadcast %cst_10 : f32 to vector<8x128xf32>
      %c0_11 = arith.constant 0 : index
      %c0_12 = arith.constant 0 : index
      %25 = vector.load %arg6[%c0_11, %c0_12] : memref<8x128xf32, #tpu.memory_space<vmem>>, vector<8x128xf32>
      tpu.vector_store %arg6[%c0_11, %c0_12], %24 {strides = array<i32>} : memref<8x128xf32, #tpu.memory_space<vmem>>, vector<8x128xf32>,
    } else {
    }
    %c0 = arith.constant 0 : index
    %c0_1 = arith.constant 0 : index
    %3 = vector.load %arg4[%c0, %c0_1] : memref<8x128xf32, #tpu.memory_space<vmem>>, vector<8x128xf32>
    %c0_2 = arith.constant 0 : index
    %c0_3 = arith.constant 0 : index
    %4 = vector.load %arg3[%c0_2, %c0_3] : memref<8x128xf32, #tpu.memory_space<vmem>>, vector<8x128xf32>
    %5 = arith.subf %3, %4 : vector<8x128xf32>
    %c0_4 = arith.constant 0 : index
    %6 = memref.load %arg2[%c0_4] : memref<1xf32, #tpu.memory_space<smem>>
    %7 = vector.broadcast %6 : f32 to vector<8x128xf32>
    %8 = arith.addf %5, %7 : vector<8x128xf32>
    %cst = arith.constant 0.000000e+00 : f32
    %9 = vector.broadcast %cst : f32 to vector<8x128xf32>
    %10 = arith.maximumf %8, %9 : vector<8x128xf32>
    %c1_i32 = arith.constant 1 : i32
    %11 = arith.muli %arg0, %c1_i32 : i32
    %12 = arith.addi %11, %arg1 : i32
    %c1024_i32 = arith.constant 1024 : i32
    %13 = arith.muli %12, %c1024_i32 : i32
    %c1024_i32_5 = arith.constant 1024 : i32
    %14 = arith.addi %13, %c1024_i32_5 : i32
    %c8_i32 = arith.constant 8 : i32
    %15 = arith.cmpi sle, %14, %c8_i32 : i32
    %16 = arith.extui %15 : i1 to i32
    %c0_i32_6 = arith.constant 0 : i32
    %17 = arith.cmpi ne, %16, %c0_i32_6 : i32
    scf.if %17 {
      %c0_10 = arith.constant 0 : index
      %c0_11 = arith.constant 0 : index
      %24 = vector.load %arg6[%c0_10, %c0_11] : memref<8x128xf32, #tpu.memory_space<vmem>>, vector<8x128xf32>
      %25 = vector.shape_cast %10 : vector<8x128xf32> to vector<1x8x128xf32>
      %cst_12 = arith.constant dense<0.000000e+00> : vector<8x128xf32>
      %26 = vector.multi_reduction <add>, %25, %cst_12 [0] : vector<1x8x128xf32> to vector<8x128xf32>
      %27 = arith.addf %24, %26 : vector<8x128xf32>
      %c0_13 = arith.constant 0 : index
      %c0_14 = arith.constant 0 : index
      %28 = vector.load %arg6[%c0_13, %c0_14] : memref<8x128xf32, #tpu.memory_space<vmem>>, vector<8x128xf32>
      tpu.vector_store %arg6[%c0_13, %c0_14], %27 {strides = array<i32>} : memref<8x128xf32, #tpu.memory_space<vmem>>, vector<8x128xf32>,
    } else {
    }
    %true = arith.constant true
    %18 = arith.xori %15, %true : i1
    %19 = arith.extui %18 : i1 to i32
    %c0_i32_7 = arith.constant 0 : i32
    %20 = arith.cmpi ne, %19, %c0_i32_7 : i32
    scf.if %20 {
      %24 = tpu.iota {dimensions = array<i32: 0>} : vector<8x128xi32>
      %25 = tpu.iota {dimensions = array<i32: 1>} : vector<8x128xi32>
      %c128_i32 = arith.constant 128 : i32
      %26 = vector.broadcast %c128_i32 : i32 to vector<8x128xi32>
      %27 = arith.muli %24, %26 : vector<8x128xi32>
      %28 = vector.broadcast %13 : i32 to vector<8x128xi32>
      %29 = arith.addi %28, %27 : vector<8x128xi32>
      %30 = arith.addi %29, %25 : vector<8x128xi32>
      %c8_i32_10 = arith.constant 8 : i32
      %31 = vector.broadcast %c8_i32_10 : i32 to vector<8x128xi32>
      %32 = arith.cmpi slt, %30, %31 : vector<8x128xi32>
      %cst_11 = arith.constant 0.000000e+00 : f32
      %33 = vector.broadcast %cst_11 : f32 to vector<8x128xf32>
      %34 = arith.select %32, %10, %33 : vector<8x128xi1>, vector<8x128xf32>
      %c0_12 = arith.constant 0 : index
      %c0_13 = arith.constant 0 : index
      %35 = vector.load %arg6[%c0_12, %c0_13] : memref<8x128xf32, #tpu.memory_space<vmem>>, vector<8x128xf32>
      %36 = vector.shape_cast %34 : vector<8x128xf32> to vector<1x8x128xf32>
      %cst_14 = arith.constant dense<0.000000e+00> : vector<8x128xf32>
      %37 = vector.multi_reduction <add>, %36, %cst_14 [0] : vector<1x8x128xf32> to vector<8x128xf32>
      %38 = arith.addf %35, %37 : vector<8x128xf32>
      %c0_15 = arith.constant 0 : index
      %c0_16 = arith.constant 0 : index
      %39 = vector.load %arg6[%c0_15, %c0_16] : memref<8x128xf32, #tpu.memory_space<vmem>>, vector<8x128xf32>
      tpu.vector_store %arg6[%c0_15, %c0_16], %38 {strides = array<i32>} : memref<8x128xf32, #tpu.memory_space<vmem>>, vector<8x128xf32>,
    } else {
    }
    %c0_i32_8 = arith.constant 0 : i32
    %21 = arith.cmpi eq, %arg1, %c0_i32_8 : i32
    %22 = arith.extui %21 : i1 to i32
    %c0_i32_9 = arith.constant 0 : i32
    %23 = arith.cmpi ne, %22, %c0_i32_9 : i32
    scf.if %23 {
      %c0_10 = arith.constant 0 : index
      %c0_11 = arith.constant 0 : index
      %24 = vector.load %arg6[%c0_10, %c0_11] : memref<8x128xf32, #tpu.memory_space<vmem>>, vector<8x128xf32>
      %c0_12 = arith.constant 0 : index
      %c0_13 = arith.constant 0 : index
      %c0_14 = arith.constant 0 : index
      %25 = vector.load %arg5[%c0_12, %c0_13, %c0_14] : memref<1x8x128xf32, #tpu.memory_space<vmem>>, vector<1x8x128xf32>
      %26 = vector.shape_cast %25 : vector<1x8x128xf32> to vector<8x128xf32>
      %27 = vector.shape_cast %24 : vector<8x128xf32> to vector<1x8x128xf32>
      tpu.vector_store %arg5[%c0_12, %c0_13, %c0_14], %27 {strides = array<i32>} : memref<1x8x128xf32, #tpu.memory_space<vmem>>, vector<1x8x128xf32>,
    } else {
    }
    return
  }
  func.func @transform_0(%arg0: i32, %arg1: i32) -> i32 {
    %c0_i32 = arith.constant 0 : i32
    %c0_i32_0 = arith.constant 0 : i32
    return %c0_i32 : i32
  }
  func.func @transform_1(%arg0: i32, %arg1: i32) -> (i32, i32) {
    %c1_i32 = arith.constant 1 : i32
    %0 = arith.muli %arg0, %c1_i32 : i32
    %1 = arith.addi %0, %arg1 : i32
    %c0_i32 = arith.constant 0 : i32
    %2 = arith.minsi %1, %c0_i32 : i32
    %c0_i32_0 = arith.constant 0 : i32
    %c0_i32_1 = arith.constant 0 : i32
    return %2, %c0_i32_0 : i32, i32
  }
  func.func @transform_2(%arg0: i32, %arg1: i32) -> (i32, i32) {
    %c1_i32 = arith.constant 1 : i32
    %0 = arith.muli %arg0, %c1_i32 : i32
    %1 = arith.addi %0, %arg1 : i32
    %c0_i32 = arith.constant 0 : i32
    %2 = arith.minsi %1, %c0_i32 : i32
    %c0_i32_0 = arith.constant 0 : i32
    %c0_i32_1 = arith.constant 0 : i32
    return %2, %c0_i32_0 : i32, i32
  }
  func.func @transform_3(%arg0: i32, %arg1: i32) -> (i32, i32, i32) {
    %c0_i32 = arith.constant 0 : i32
    %c0_i32_0 = arith.constant 0 : i32
    %c0_i32_1 = arith.constant 0 : i32
    return %arg0, %c0_i32, %c0_i32_0 : i32, i32, i32
  }
}

</mosaic_0001>

<llo_original>
// kernel: tpu_custom_call.1
$region0: #{tpu_custom_call.1}
  #allocation0 [shape = 'u32[]', space=smem, size = 0x4, offset = 0x4, fixed_abs, tag = 'smem constant byte address 0x4 - core index']
  #allocation1 [shape = 'u32[72,128]{1,0:T(1,128)}', space=vmem, size = 0x9000, scoped, tag = 'internal scratch']
  #allocation2 [shape = 'f32[8,128]{1,0:T(8,128)}', space=vmem, size = 0x1000, scoped, tag = 'scratch operand']
  #allocation3 [shape = 'f32[1]{0:T(128)S(6)}', space=smem, size = 0x200, scoped, tag = 'scoped memory for tpu_custom_call.1']
  %s0 = inlined_call_operand.<no memory space> [shape: f32[1], index: 0, kind: input, shape index: {}]
  %s1 = inlined_call_operand.vmem [shape: f32[1,128], index: 1, kind: input, shape index: {}]
  %s2 = inlined_call_operand.vmem [shape: f32[1,128], index: 2, kind: input, shape index: {}]
  %s3 = inlined_call_operand.hbm [shape: f32[1,8,128], index: 3, kind: output, shape index: {}]
  %s4 = sld [smem:[#allocation0]]
  $region38: #{tpu_custom_call.1} parent=0
    _
  %s6 = ssub.s32 1, %s4
  %s7 = scalar_select 0, %s6, %s4
  %8 = sst [smem:[#allocation3]] %s0
  $region1: #{tpu_custom_call.1} parent=0
    #allocation4 [shape = 'u8[4096]{0}', space=vmem, size = 0x1000, scoped, tag = 'output window, operand 0, single buffered']
    #allocation5 [shape = 's32[1]{0}', space=sflag, size = 0x4, scoped, tag = 'scoped memory for tpu_custom_call.1']
    %9 = vsyncpa [#allocation5], 0
    // Predicated region
    $region2: #{tpu_custom_call.1} parent=1 // pred_check
      _
    $region3: #{tpu_custom_call.1} parent=1 // pred_check_branch
      %11 = sbr.rel (0) target = $region5
    $region4: #{tpu_custom_call.1} parent=1 // pred_region
      _
    $region5: #{tpu_custom_call.1} parent=1 // pred_fallthru
      _
    // Predicated region
    $region6: #{tpu_custom_call.1} parent=1 // pred_check
      _
    $region7: #{tpu_custom_call.1} parent=1 // pred_check_branch
      %13 = sbr.rel (0) target = $region9
    $region8: #{tpu_custom_call.1} parent=1 // pred_region
      %s14 = sadd.s32 0, 0
      %p15 = scmp.lt.s32.totalorder %s14, 0
      %s16 = scalar_select %p15, %s14, 0
      %s17 = smul.u32 8, %s16
      %s18 = ssub.s32 1, %s17
      %p19 = scmp.lt.s32.totalorder %s17, 0
      %s20 = scalar_select %p19, %s17, 0
      %s21 = scalar_lea.vmem %s1, %s20
      %s22 = sadd.s32 0, 0
      %p23 = scmp.lt.s32.totalorder %s22, 0
      %s24 = scalar_select %p23, %s22, 0
      %s25 = smul.u32 8, %s24
      %s26 = ssub.s32 1, %s25
    $region9: #{tpu_custom_call.1} parent=1 // pred_fallthru
      _
    // Predicated region
    $region10: #{tpu_custom_call.1} parent=1 // pred_check
      _
    $region11: #{tpu_custom_call.1} parent=1 // pred_check_branch
      %28 = sbr.rel (0) target = $region13
    $region12: #{tpu_custom_call.1} parent=1 // pred_region
      %s29 = sadd.s32 0, 0
      %p30 = scmp.lt.s32.totalorder %s29, 0
      %s31 = scalar_select %p30, %s29, 0
      %s32 = smul.u32 8, %s31
      %s33 = ssub.s32 1, %s32
      %p34 = scmp.lt.s32.totalorder %s32, 0
      %s35 = scalar_select %p34, %s32, 0
      %s36 = scalar_lea.vmem %s2, %s35
      %s37 = sadd.s32 0, 0
      %p38 = scmp.lt.s32.totalorder %s37, 0
      %s39 = scalar_select %p38, %s37, 0
      %s40 = smul.u32 8, %s39
      %s41 = ssub.s32 1, %s40
    $region13: #{tpu_custom_call.1} parent=1 // pred_fallthru
      _
    %s42 = sadd.s32 0, 0
    %p43 = scmp.lt.s32.totalorder %s42, 0
    %s44 = scalar_select %p43, %s42, 0
    %s45 = smul.u32 8, %s44
    %s46 = ssub.s32 1, %s45
    %p47 = scmp.lt.s32.totalorder %s45, 0
    %s48 = scalar_select %p47, %s45, 0
    %s49 = scalar_lea.vmem %s1, %s48
    %s50 = sadd.s32 0, 0
    %p51 = scmp.lt.s32.totalorder %s50, 0
    %s52 = scalar_select %p51, %s50, 0
    %s53 = smul.u32 8, %s52
    %s54 = ssub.s32 1, %s53
    %p55 = scmp.lt.s32.totalorder %s53, 0
    %s56 = scalar_select %p55, %s53, 0
    %s57 = scalar_lea.vmem %s2, %s56
    %s58 = sadd.s32 0, 0
    %p59 = scmp.lt.s32.totalorder %s58, 0
    %s60 = scalar_select %p59, %s58, 0
    %s61 = smul.u32 8, %s60
    %s62 = ssub.s32 1, %s61
    %p63 = scmp.lt.s32.totalorder %s61, 0
    %s64 = scalar_select %p63, %s61, 0
    %s65 = scalar_lea.vmem %s1, %s64
    %s66 = sadd.s32 0, 0
    %p67 = scmp.lt.s32.totalorder %s66, 0
    %s68 = scalar_select %p67, %s66, 0
    %s69 = smul.u32 8, %s68
    %s70 = ssub.s32 1, %s69
    %s71 = sadd.s32 0, 0
    %p72 = scmp.lt.s32.totalorder %s71, 0
    %s73 = scalar_select %p72, %s71, 0
    %s74 = smul.u32 8, %s73
    %s75 = ssub.s32 1, %s74
    %p76 = scmp.lt.s32.totalorder %s74, 0
    %s77 = scalar_select %p76, %s74, 0
    %s78 = scalar_lea.vmem %s2, %s77
    %s79 = sadd.s32 0, 0
    %p80 = scmp.lt.s32.totalorder %s79, 0
    %s81 = scalar_select %p80, %s79, 0
    %s82 = smul.u32 8, %s81
    %s83 = ssub.s32 1, %s82
    %p84 = scmp.eq.s32.totalorder 0, 0
    // Predicated region
    $region14: #{tpu_custom_call.1} parent=1 // pred_check
      %p85 = pneg %p84
    $region15: #{tpu_custom_call.1} parent=1 // pred_check_branch
      %87 = sbr.rel (%p85) target = $region17
    $region16: #{tpu_custom_call.1} parent=1 // pred_region
      %88 = vst [vmem:[#allocation2] sm:$0xff] 0.0
    $region17: #{tpu_custom_call.1} parent=1 // pred_fallthru
      _
    %v89 = vld [vmem:[%s78] sm:$0xff]
    %v90 = vld [vmem:[%s65] sm:$0xff]
    %v91 = vsub.f32 %v89, %v90
    %s92 = sld [smem:[#allocation3]]
    %v93 = vstv %s92
    %v94 = vadd.f32 %v91, %v93
    %v95 = vmax.f32 %v94, 0.0
    %s96 = sadd.s32 0, 0
    %s97 = smul.u32 %s96, 1024
    %s98 = sadd.s32 %s97, 1024
    %p99 = scmp.le.s32.totalorder %s98, 8
    // Predicated region
    $region18: #{tpu_custom_call.1} parent=1 // pred_check
      %p100 = pneg %p99
    $region19: #{tpu_custom_call.1} parent=1 // pred_check_branch
      %102 = sbr.rel (%p100) target = $region21
    $region20: #{tpu_custom_call.1} parent=1 // pred_region
      %v103 = vld [vmem:[#allocation2] sm:$0xff]
      %v104 = vadd.f32 %v95, 0.0
      %v105 = vadd.f32 %v103, %v104
      %106 = vst [vmem:[#allocation2] sm:$0xff] %v105
    $region21: #{tpu_custom_call.1} parent=1 // pred_fallthru
      _
    %p107 = scmp.gt.s32.totalorder %s98, 8
    // Predicated region
    $region22: #{tpu_custom_call.1} parent=1 // pred_check
      %p108 = pneg %p107
    $region23: #{tpu_custom_call.1} parent=1 // pred_check_branch
      %110 = sbr.rel (%p108) target = $region25
    $region24: #{tpu_custom_call.1} parent=1 // pred_region
      %v111 = vlaneseq
      %v112 = vshrl.u32 %v111, 7
      %v113 = vlaneseq
      %v114 = vand.u32 %v113, 127
      %v115 = vmul.u32 %v112, 128
      %v116 = vstv %s97
      %v117 = vadd.s32 %v116, %v115
      %v118 = vadd.s32 %v117, %v114
      %vm119 = vcmp.lt.s32.totalorder %v118, 8
      %v120 = vsel %vm119, %v95, 0.0
      %v121 = vld [vmem:[#allocation2] sm:$0xff]
      %v122 = vadd.f32 %v120, 0.0
      %v123 = vadd.f32 %v121, %v122
      %124 = vst [vmem:[#allocation2] sm:$0xff] %v123
    $region25: #{tpu_custom_call.1} parent=1 // pred_fallthru
      _
    // Predicated region
    $region26: #{tpu_custom_call.1} parent=1 // pred_check
      %p125 = pneg %p84
    $region27: #{tpu_custom_call.1} parent=1 // pred_check_branch
      %127 = sbr.rel (%p125) target = $region29
    $region28: #{tpu_custom_call.1} parent=1 // pred_region
      %v128 = vld [vmem:[#allocation2] sm:$0xff]
      %129 = vst [vmem:[#allocation4] sm:$0xff] %v128
    $region29: #{tpu_custom_call.1} parent=1 // pred_fallthru
      _
    // Predicated region
    $region30: #{tpu_custom_call.1} parent=1 // pred_check
      _
    $region31: #{tpu_custom_call.1} parent=1 // pred_check_branch
      %131 = sbr.rel (0) target = $region33
    $region32: #{tpu_custom_call.1} parent=1 // pred_region
      %133 = vsyncadd [#allocation5], 0
      %s135 = sshll.u32 [#allocation4], 4
      %s136 = int_to_ptr.vmem [resolvable:$true] %s135
      %s137 = sshll.u32 %s3, 4
      %s138 = int_to_ptr.hbm [resolvable:$true] %s137
      %140 = dma.vmem_to_hbm [thread:$0]  %s136, 128, %s138, [#allocation5]
    $region33: #{tpu_custom_call.1} parent=1 // pred_fallthru
      _
    // Predicated region
    $region34: #{tpu_custom_call.1} parent=1 // pred_check
      _
    $region35: #{tpu_custom_call.1} parent=1 // pred_check_branch
      %142 = sbr.rel (0) target = $region37
    $region36: #{tpu_custom_call.1} parent=1 // pred_region
      %144 = dma.done [#allocation5], 128
    $region37: #{tpu_custom_call.1} parent=1 // pred_fallthru
      _
    %145 = vsyncpa [#allocation5], 1

</llo_original>
